<compile_context>
chip_gen: v7x
topology: tpu7x:2x2x1
jax: 0.10.0
libtpu: 0.0.40
codegen_flags: <defaults>
</compile_context>

<pallas_src>
import math
import numpy as np
import jax
import jax.numpy as jnp
from jax import lax
from jax.experimental import pallas as pl
from jax.experimental.pallas import tpu as pltpu

LRELU_SLOPE = 0.2
MBSTD_ALPHA = 1e-8
K1 = 3   # conv_1 kernel size
K2 = 4   # conv_2 kernel size


def _lrelu(v):
    # single vmax instead of compare+select
    return jnp.maximum(v, LRELU_SLOPE * v)


# ---------------- prologue kernel: MinibatchStdDev scalar ----------------
def mbstd_scalar_kernel(x_ref, s_ref):
    """x_ref: (B, H, W, C) f32 -> s_ref: (1, 1) f32 batch-stddev constant."""
    # TODO(synk): grid this full-batch reduction for inputs too large for a
    # single VMEM-resident pass.
    x = x_ref[...]
    mu = jnp.mean(x, axis=0, keepdims=True)
    d = x - mu
    std = jnp.sqrt(jnp.mean(d * d, axis=0) + MBSTD_ALPHA)      # (H, W, C)
    s_ref[...] = jnp.reshape(jnp.mean(std), (1, 1))


# ---------------- main kernel: conv_1 -> lrelu -> conv_2 -> lrelu -> conv_3 ----------------
def dis_final_block_kernel(scal_ref, x_ref, w1_ref, w2_ref, small_ref,
                           out_ref, xp_ref):
    """One batch tile per grid step.

    scal_ref : SMEM (2,) f32            [mbstd constant s, conv_3 bias b3]
    x_ref    : VMEM (TB, H, W, C) f32   input tile (NHWC)
    w1_ref   : VMEM (9*C, C)  bf16      conv_1 weight, im2col (kh,kw,cin) x cout
    w2_ref   : VMEM (16*C, C) bf16      conv_2 weight, im2col (kh,kw,cin) x cout
    small_ref: VMEM (3+H*W, C) f32      rows [b1, b2, w3, stat_map (H*W rows)]
    out_ref  : VMEM (1, TB*Ho*Wo, 1) f32
    xp_ref   : VMEM scratch (TB, H+2, W+2, C) bf16 (zero-padded conv_1 input)
    """
    TB, H, W, C = x_ref.shape
    Ho, Wo = H - K2 + 1, W - K2 + 1
    HW = H * W
    bf16 = jnp.bfloat16

    s = scal_ref[0]                         # mbstd constant (from prologue)
    b3 = scal_ref[1]                        # conv_3 bias
    b1 = small_ref[0:1, :]                  # (1, C)
    b2 = small_ref[1:2, :]                  # (1, C)
    w3 = small_ref[2:3, :]                  # (1, C)  conv_3 per-channel weight
    stat_map = small_ref[3:3 + HW, :]       # (H*W, C) conv_1 response to stddev ch.

    # ---- zero pad (pad=1) via scratch: border stores + one interior store ----
    # Border re-zeroed every step so each megacore shard is self-consistent.
    zrow = jnp.zeros((TB, 1, W + 2, C), bf16)
    zcol = jnp.zeros((TB, H, 1, C), bf16)
    xp_ref[:, 0:1, :, :] = zrow
    xp_ref[:, H + 1:H + 2, :, :] = zrow
    xp_ref[:, 1:H + 1, 0:1, :] = zcol
    xp_ref[:, 1:H + 1, W + 1:W + 2, :] = zcol
    xp_ref[:, 1:H + 1, 1:W + 1, :] = x_ref[...].astype(bf16)
    xp = xp_ref[...]

    # ---- conv_1 (3x3, pad 1): one lane-aligned im2col matmul over C channels;
    #      the constant stddev channel contributes s * stat_map (no C+1 in K) ----
    p1 = jnp.concatenate(
        [xp[:, kh:kh + H, kw:kw + W, :] for kh in range(K1) for kw in range(K1)],
        axis=-1).reshape(TB * HW, K1 * K1 * C)                  # (TB*H*W, 9C) bf16
    a1 = jnp.dot(p1, w1_ref[...], preferred_element_type=jnp.float32)
    a1 = a1.reshape(TB, HW, C) + b1[None] + s * stat_map[None]  # f32 elementwise
    a1 = _lrelu(a1)

    # ---- conv_2 (4x4, valid): one im2col matmul ----
    a1 = a1.reshape(TB, H, W, C).astype(bf16)
    if Ho == 1 and Wo == 1:
        # 4x4 window covers the whole map: (kh,kw,cin) im2col order == NHWC order.
        p2 = a1.reshape(TB, K2 * K2 * C)
    else:
        p2 = jnp.concatenate(
            [a1[:, kh:kh + Ho, kw:kw + Wo, :] for kh in range(K2) for kw in range(K2)],
            axis=-1).reshape(TB * Ho * Wo, K2 * K2 * C)
    a2 = jnp.dot(p2, w2_ref[...], preferred_element_type=jnp.float32) + b2
    a2 = _lrelu(a2)                                             # (TB*Ho*Wo, C) f32

    # ---- conv_3 (1x1 -> 1): VPU multiply + lane reduction (no N=1 MXU dot) ----
    # Output kept (M2, 1) to avoid a sublane->lane relayout; the whole output is
    # only B*Ho*Wo scalars, so the masked narrow store is negligible.
    y = jnp.sum(a2 * w3, axis=-1, keepdims=True) + b3           # (TB*Ho*Wo, 1)
    out_ref[...] = y.reshape(1, TB * Ho * Wo, 1)


# ---------------- parameters ----------------
def init_params(key, in_channels):
    """PyTorch init: weight ~ N(0,1), bias = 0; EqualLR scales weight by sqrt(2/fan_in)."""
    C = in_channels
    k1, k2, k3 = jax.random.split(key, 3)
    w1_oihw = jax.random.normal(k1, (C, C + 1, 3, 3), jnp.float32)
    w2_oihw = jax.random.normal(k2, (C, C, 4, 4), jnp.float32)
    w3_oihw = jax.random.normal(k3, (1, C, 1, 1), jnp.float32)
    s1 = math.sqrt(2.0 / ((C + 1) * 3 * 3))
    s2 = math.sqrt(2.0 / (C * 4 * 4))
    s3 = math.sqrt(2.0 / (C * 1 * 1))
    return dict(
        w1_oihw=w1_oihw * s1,
        w2_oihw=w2_oihw * s2,
        w3_oihw=w3_oihw * s3,
        b1=jnp.zeros((C,), jnp.float32),
        b2=jnp.zeros((C,), jnp.float32),
        b3=jnp.zeros((1,), jnp.float32),
    )


# ---------------- sizing helpers ----------------
def _pick_tb(B, C, H, W, budget_bytes=8 * 1024 * 1024):
    """Largest divisor of B whose per-tile working set fits the budget."""
    HW = H * W
    Ho, Wo = H - K2 + 1, W - K2 + 1
    per_b = (HW * C * 4 * 2                      # x tile (double-buffered, f32)
             + (H + 2) * (W + 2) * C * 2         # padded scratch (bf16)
             + HW * K1 * K1 * C * 2              # p1 (bf16)
             + HW * C * 6                        # a1 f32 + bf16 copy
             + Ho * Wo * K2 * K2 * C * 2         # p2 (bf16)
             + Ho * Wo * C * 4)                  # a2 (f32)
    tb = 1
    for cand in range(1, B + 1):
        if B % cand == 0 and cand * per_b <= budget_bytes:
            tb = cand
    return tb


def _vmem_limit_bytes(tb, C, H, W):
    """Floor 32 MiB (beats v5e's 16 MiB scoped default), cap 48 MiB (v7x headroom)."""
    HW = H * W
    Ho, Wo = H - K2 + 1, W - K2 + 1
    needed = (
        2 * tb * HW * C * 4                                  # x tile, double-buffered
        + 2 * (K1 * K1 * C * C + K2 * K2 * C * C) * 2        # w1 + w2 (bf16)
        + 2 * (3 + HW) * C * 4                               # packed small params
        + tb * (H + 2) * (W + 2) * C * 2                     # padded scratch
        + tb * HW * K1 * K1 * C * 2                          # p1
        + tb * HW * C * 6                                    # a1 (f32 + bf16)
        + tb * Ho * Wo * K2 * K2 * C * 2                     # p2
        + tb * Ho * Wo * C * 4                               # a2
        + 2 * tb * Ho * Wo * 4                               # out tile
    )
    # 1.5x margin for relayout temporaries (not counted above).
    return int(min(48 * 1024 * 1024, max(32 * 1024 * 1024, needed + needed // 2)))


# ---------------- wrapper ----------------
def dis_final_block_pallas(x_nchw, params, tb=None):
    B, C, H, W = x_nchw.shape
    Ho, Wo = H - K2 + 1, W - K2 + 1
    x = jnp.transpose(x_nchw, (0, 2, 3, 1)).astype(jnp.float32)        # NCHW -> NHWC

    # ---- prologue: MinibatchStdDev scalar (full-batch reduction) ----
    s_arr = pl.pallas_call(
        mbstd_scalar_kernel,
        out_shape=jax.ShapeDtypeStruct((1, 1), jnp.float32),
        in_specs=[pl.BlockSpec(memory_space=pltpu.MemorySpace.VMEM)],
        out_specs=pl.BlockSpec(memory_space=pltpu.MemorySpace.VMEM),
        compiler_params=pltpu.CompilerParams(
            vmem_limit_bytes=int(min(48 << 20, max(32 << 20, 4 * B * H * W * C * 4)))),
    )(x)

    # ---- weight prep: im2col layouts, bf16 MXU operands ----
    w1_oihw = params['w1_oihw']                      # (C, C+1, 3, 3) EqualLR-scaled
    w1_reg = w1_oihw[:, :C]                          # regular input channels
    w1_stat = w1_oihw[:, C:C + 1]                    # stddev-channel slice (C,1,3,3)
    w1 = jnp.transpose(w1_reg, (2, 3, 1, 0)).reshape(K1 * K1 * C, C).astype(jnp.bfloat16)
    w2 = jnp.transpose(params['w2_oihw'], (2, 3, 1, 0)).reshape(K2 * K2 * C, C).astype(jnp.bfloat16)
    # TODO(synk): optionally quantize w2 to int8 (v5e/v6e) or fp8 (v7x) with
    # per-output-channel scales when weight HBM traffic dominates at large C.

    # data-independent conv_1 response to a unit stddev channel (zero-padded ones map)
    ones = jnp.ones((1, 1, H, W), jnp.float32)
    stat_map = lax.conv_general_dilated(
        ones, w1_stat, (1, 1), [(1, 1), (1, 1)],
        dimension_numbers=('NCHW', 'OIHW', 'NCHW'))[0]                 # (C, H, W)
    stat_map = jnp.transpose(stat_map, (1, 2, 0)).reshape(H * W, C)

    # pack biases + conv_3 weight + stat_map into one small VMEM array
    small = jnp.concatenate(
        [params['b1'].reshape(1, C).astype(jnp.float32),
         params['b2'].reshape(1, C).astype(jnp.float32),
         params['w3_oihw'].reshape(1, C).astype(jnp.float32),
         stat_map.astype(jnp.float32)], axis=0)                        # (3+H*W, C)

    # true scalars through SMEM: [mbstd constant, conv_3 bias]
    scalars = jnp.concatenate(
        [s_arr.reshape(1), params['b3'].reshape(1).astype(jnp.float32)], axis=0)

    if tb is None:
        tb = _pick_tb(B, C, H, W)
    assert B % tb == 0, (B, tb)
    nb = B // tb

    grid_spec = pltpu.PrefetchScalarGridSpec(
        num_scalar_prefetch=0,
        grid=(nb,),
        in_specs=[
            pl.BlockSpec(memory_space=pltpu.MemorySpace.SMEM),          # scalars
            pl.BlockSpec((tb, H, W, C), lambda b: (b, 0, 0, 0)),        # x (streamed)
            pl.BlockSpec((K1 * K1 * C, C), lambda b: (0, 0)),           # w1 (resident)
            pl.BlockSpec((K2 * K2 * C, C), lambda b: (0, 0)),           # w2 (resident)
            pl.BlockSpec((3 + H * W, C), lambda b: (0, 0)),             # small (resident)
        ],
        out_specs=pl.BlockSpec((1, tb * Ho * Wo, 1), lambda b: (b, 0, 0)),
        scratch_shapes=[pltpu.VMEM((tb, H + 2, W + 2, C), jnp.bfloat16)],
    )

    out = pl.pallas_call(
        dis_final_block_kernel,
        out_shape=jax.ShapeDtypeStruct((nb, tb * Ho * Wo, 1), jnp.float32),
        grid_spec=grid_spec,
        compiler_params=pltpu.CompilerParams(
            dimension_semantics=("parallel",),
            vmem_limit_bytes=_vmem_limit_bytes(tb, C, H, W)),
    )(scalars, x, w1, w2, small)

    # (block, batch-within-block, ho*wo) row-major == PyTorch (B,1,Ho,Wo).view(-1)
    return out.reshape(-1)


# ---------------- pure-JAX reference (verification) ----------------
def dis_final_block_reference(x_nchw, params):
    x = x_nchw.astype(jnp.float32)
    mu = jnp.mean(x, axis=0, keepdims=True)
    std = jnp.sqrt(jnp.mean((x - mu) ** 2, axis=0) + MBSTD_ALPHA)
    s = jnp.mean(std)
    B, C, H, W = x.shape
    stat = jnp.full((B, 1, H, W), s, jnp.float32)
    y = jnp.concatenate([x, stat], axis=1)

    def conv(inp, w, b, pad):
        o = lax.conv_general_dilated(inp, w, (1, 1), pad,
                                     dimension_numbers=('NCHW', 'OIHW', 'NCHW'))
        return o + b.reshape(1, -1, 1, 1)

    y = _lrelu(conv(y, params['w1_oihw'], params['b1'], [(1, 1), (1, 1)]))
    y = _lrelu(conv(y, params['w2_oihw'], params['b2'], [(0, 0), (0, 0)]))
    y = conv(y, params['w3_oihw'], params['b3'], [(0, 0), (0, 0)])
    return y.reshape(-1)


if __name__ == "__main__":
    key = jax.random.PRNGKey(0)
    kx, kp = jax.random.split(key)
    # MSG-GAN final discriminator block operates on 4x4 feature maps.
    B, C, H, W = 4, 8, 4, 4
    x = jax.random.normal(kx, (B, C, H, W), jnp.float32)
    params = init_params(kp, C)

    out = jax.block_until_ready(dis_final_block_pallas(x, params, tb=2))  # grid of 2 batch tiles
    ref = jax.block_until_ready(dis_final_block_reference(x, params))

    assert out.shape == (B * (H - 3) * (W - 3),), out.shape
    # bf16 matmul operands with f32 accumulation -> small approximation error
    # vs the f32 reference.
    np.testing.assert_allclose(np.asarray(out), np.asarray(ref), rtol=5e-2, atol=1e-1)
    print("KERNEL_OK")
</pallas_src>

<mosaic_0001>
module attributes {stable_mosaic.version = 11 : i64} {
  func.func @mbstd_scalar_kernel(%arg0: memref<4x4x4x8xf32, #tpu.memory_space<vmem>>, %arg1: memref<1x1xf32, #tpu.memory_space<vmem>>) attributes {dimension_semantics = [], scalar_prefetch = 0 : i64, scratch_operands = 0 : i64, tpu.core_type = #tpu.core_type<tc>} {
    %c0 = arith.constant 0 : index
    %c0_0 = arith.constant 0 : index
    %c0_1 = arith.constant 0 : index
    %c0_2 = arith.constant 0 : index
    %0 = vector.load %arg0[%c0, %c0_0, %c0_1, %c0_2] : memref<4x4x4x8xf32, #tpu.memory_space<vmem>>, vector<4x4x4x8xf32>
    %cst = arith.constant dense<0.000000e+00> : vector<4x4x8xf32>
    %1 = vector.multi_reduction <add>, %0, %cst [0] : vector<4x4x4x8xf32> to vector<4x4x8xf32>
    %2 = vector.shape_cast %1 : vector<4x4x8xf32> to vector<1x4x4x8xf32>
    %cst_3 = arith.constant 4.000000e+00 : f32
    %3 = vector.broadcast %cst_3 : f32 to vector<1x4x4x8xf32>
    %4 = arith.divf %2, %3 : vector<1x4x4x8xf32>
    %5 = vector.broadcast %4 : vector<1x4x4x8xf32> to vector<4x4x4x8xf32>
    %6 = arith.subf %0, %5 : vector<4x4x4x8xf32>
    %7 = arith.mulf %6, %6 : vector<4x4x4x8xf32>
    %cst_4 = arith.constant dense<0.000000e+00> : vector<4x4x8xf32>
    %8 = vector.multi_reduction <add>, %7, %cst_4 [0] : vector<4x4x4x8xf32> to vector<4x4x8xf32>
    %cst_5 = arith.constant 4.000000e+00 : f32
    %9 = vector.broadcast %cst_5 : f32 to vector<4x4x8xf32>
    %10 = arith.divf %8, %9 : vector<4x4x8xf32>
    %cst_6 = arith.constant 9.99999993E-9 : f32
    %11 = vector.broadcast %cst_6 : f32 to vector<4x4x8xf32>
    %12 = arith.addf %10, %11 : vector<4x4x8xf32>
    %13 = math.sqrt %12 : vector<4x4x8xf32>
    %14 = vector.shape_cast %13 : vector<4x4x8xf32> to vector<1x4x4x8xf32>
    %cst_7 = arith.constant dense<0.000000e+00> : vector<1xf32>
    %15 = vector.multi_reduction <add>, %14, %cst_7 [1, 2, 3] : vector<1x4x4x8xf32> to vector<1xf32>
    %16 = vector.shape_cast %15 : vector<1xf32> to vector<1x1x1x1xf32>
    %17 = vector.extract %16[0, 0, 0, 0] : f32 from vector<1x1x1x1xf32>
    %cst_8 = arith.constant 1.280000e+02 : f32
    %18 = arith.divf %17, %cst_8 : f32
    %19 = vector.broadcast %18 : f32 to vector<1x1xf32>
    %c0_9 = arith.constant 0 : index
    %c0_10 = arith.constant 0 : index
    %20 = vector.load %arg1[%c0_9, %c0_10] : memref<1x1xf32, #tpu.memory_space<vmem>>, vector<1x1xf32>
    tpu.vector_store %arg1[%c0_9, %c0_10], %19 {strides = array<i32>} : memref<1x1xf32, #tpu.memory_space<vmem>>, vector<1x1xf32>,
    return
  }
}

</mosaic_0001>

<llo_original>
// kernel: tpu_custom_call.1
$region0: #{tpu_custom_call.1}
  #allocation0 [shape = 'u32[]', space=smem, size = 0x4, offset = 0x4, fixed_abs, tag = 'smem constant byte address 0x4 - core index']
  #allocation1 [shape = 'u32[144,128]{1,0:T(1,128)}', space=vmem, size = 0x12000, scoped, tag = 'internal scratch']
  %s0 = inlined_call_operand.hbm [shape: f32[4,4,4,8], index: 0, kind: input, shape index: {}]
  %s1 = inlined_call_operand.hbm [shape: f32[1,1], index: 1, kind: output, shape index: {}]
  %s2 = sld [smem:[#allocation0]]
  $region18: #{tpu_custom_call.1} parent=0
    _
  %s4 = ssub.s32 1, %s2
  %s5 = scalar_select 0, %s4, %s2
  $region1: #{tpu_custom_call.1} parent=0
    #allocation2 [shape = 'u8[32768]{0}', space=vmem, size = 0x8000, scoped, tag = 'input window, operand 0, single buffered']
    #allocation3 [shape = 's32[1]{0}', space=sflag, size = 0x4, scoped, tag = 'scoped memory for tpu_custom_call.1']
    #allocation4 [shape = 's32[1]{0}', space=sflag, size = 0x4, scoped, tag = 'scoped memory for tpu_custom_call.1']
    #allocation5 [shape = 'u8[512]{0}', space=vmem, size = 0x400, scoped, tag = 'output window, operand 0, single buffered']
    %6 = vsyncpa [#allocation3], 0
    %7 = vsyncpa [#allocation4], 0
    // Predicated region
    $region2: #{tpu_custom_call.1} parent=1 // pred_check
      _
    $region3: #{tpu_custom_call.1} parent=1 // pred_check_branch
      %9 = sbr.rel (0) target = $region5
    $region4: #{tpu_custom_call.1} parent=1 // pred_region
      %s11 = ssub.s32 1024, 1024
      %12 = vsyncadd [#allocation3], %s11
      %s13 = sshll.u32 [#allocation2], 4
      %s14 = int_to_ptr.vmem [resolvable:$true] %s13
      %19 = dma.hbm_to_vmem [thread:$0]  %s0, 1024, %s14, [#allocation3], 64, 64, 4
    $region5: #{tpu_custom_call.1} parent=1 // pred_fallthru
      _
    // Predicated region
    $region6: #{tpu_custom_call.1} parent=1 // pred_check
      _
    $region7: #{tpu_custom_call.1} parent=1 // pred_check_branch
      %21 = sbr.rel (0) target = $region9
    $region8: #{tpu_custom_call.1} parent=1 // pred_region
      %22 = dma.done [#allocation3], 1024
    $region9: #{tpu_custom_call.1} parent=1 // pred_fallthru
      _
    %v23 = vld [vmem:[#allocation2] sm:$0xf]
    %v24 = vld [vmem:[#allocation2 + $0x4] sm:$0xf]
    %v25 = vld [vmem:[#allocation2 + $0x8] sm:$0xf]
    %v26 = vld [vmem:[#allocation2 + $0xc] sm:$0xf]
    %v27 = vld [vmem:[#allocation2 + $0x10] sm:$0xf]
    %v28 = vld [vmem:[#allocation2 + $0x14] sm:$0xf]
    %v29 = vld [vmem:[#allocation2 + $0x18] sm:$0xf]
    %v30 = vld [vmem:[#allocation2 + $0x1c] sm:$0xf]
    %v31 = vld [vmem:[#allocation2 + $0x20] sm:$0xf]
    %v32 = vld [vmem:[#allocation2 + $0x24] sm:$0xf]
    %v33 = vld [vmem:[#allocation2 + $0x28] sm:$0xf]
    %v34 = vld [vmem:[#allocation2 + $0x2c] sm:$0xf]
    %v35 = vld [vmem:[#allocation2 + $0x30] sm:$0xf]
    %v36 = vld [vmem:[#allocation2 + $0x34] sm:$0xf]
    %v37 = vld [vmem:[#allocation2 + $0x38] sm:$0xf]
    %v38 = vld [vmem:[#allocation2 + $0x3c] sm:$0xf]
    %vm39 = vcmask 60416
    %v40 = vsel %vm39, %v23, 0.0
    %v41 = vsel %vm39, %v27, 0.0
    %v42 = vadd.f32 %v40, %v41
    %v43 = vsel %vm39, %v31, 0.0
    %v44 = vadd.f32 %v42, %v43
    %v45 = vsel %vm39, %v35, 0.0
    %v46 = vadd.f32 %v44, %v45
    %v47 = vsel %vm39, %v24, 0.0
    %v48 = vsel %vm39, %v28, 0.0
    %v49 = vadd.f32 %v47, %v48
    %v50 = vsel %vm39, %v32, 0.0
    %v51 = vadd.f32 %v49, %v50
    %v52 = vsel %vm39, %v36, 0.0
    %v53 = vadd.f32 %v51, %v52
    %v54 = vsel %vm39, %v25, 0.0
    %v55 = vsel %vm39, %v29, 0.0
    %v56 = vadd.f32 %v54, %v55
    %v57 = vsel %vm39, %v33, 0.0
    %v58 = vadd.f32 %v56, %v57
    %v59 = vsel %vm39, %v37, 0.0
    %v60 = vadd.f32 %v58, %v59
    %v61 = vsel %vm39, %v26, 0.0
    %v62 = vsel %vm39, %v30, 0.0
    %v63 = vadd.f32 %v61, %v62
    %v64 = vsel %vm39, %v34, 0.0
    %v65 = vadd.f32 %v63, %v64
    %v66 = vsel %vm39, %v38, 0.0
    %v67 = vadd.f32 %v65, %v66
    %v68 = vrcp.pop 4.0
    %v69 = vmul.f32 %v46, %v68
    %v70 = vmul.f32 %v53, %v68
    %v71 = vmul.f32 %v60, %v68
    %v72 = vmul.f32 %v67, %v68
    %v73 = vsub.f32 %v23, %v69
    %v74 = vsub.f32 %v24, %v70
    %v75 = vsub.f32 %v25, %v71
    %v76 = vsub.f32 %v26, %v72
    %v77 = vsub.f32 %v27, %v69
    %v78 = vsub.f32 %v28, %v70
    %v79 = vsub.f32 %v29, %v71
    %v80 = vsub.f32 %v30, %v72
    %v81 = vsub.f32 %v31, %v69
    %v82 = vsub.f32 %v32, %v70
    %v83 = vsub.f32 %v33, %v71
    %v84 = vsub.f32 %v34, %v72
    %v85 = vsub.f32 %v35, %v69
    %v86 = vsub.f32 %v36, %v70
    %v87 = vsub.f32 %v37, %v71
    %v88 = vsub.f32 %v38, %v72
    %v89 = vmul.f32 %v73, %v73
    %v90 = vmul.f32 %v74, %v74
    %v91 = vmul.f32 %v75, %v75
    %v92 = vmul.f32 %v76, %v76
    %v93 = vmul.f32 %v77, %v77
    %v94 = vmul.f32 %v78, %v78
    %v95 = vmul.f32 %v79, %v79
    %v96 = vmul.f32 %v80, %v80
    %v97 = vmul.f32 %v81, %v81
    %v98 = vmul.f32 %v82, %v82
    %v99 = vmul.f32 %v83, %v83
    %v100 = vmul.f32 %v84, %v84
    %v101 = vmul.f32 %v85, %v85
    %v102 = vmul.f32 %v86, %v86
    %v103 = vmul.f32 %v87, %v87
    %v104 = vmul.f32 %v88, %v88
    %v105 = vsel %vm39, %v89, 0.0
    %v106 = vsel %vm39, %v93, 0.0
    %v107 = vadd.f32 %v105, %v106
    %v108 = vsel %vm39, %v97, 0.0
    %v109 = vadd.f32 %v107, %v108
    %v110 = vsel %vm39, %v101, 0.0
    %v111 = vadd.f32 %v109, %v110
    %v112 = vsel %vm39, %v90, 0.0
    %v113 = vsel %vm39, %v94, 0.0
    %v114 = vadd.f32 %v112, %v113
    %v115 = vsel %vm39, %v98, 0.0
    %v116 = vadd.f32 %v114, %v115
    %v117 = vsel %vm39, %v102, 0.0
    %v118 = vadd.f32 %v116, %v117
    %v119 = vsel %vm39, %v91, 0.0
    %v120 = vsel %vm39, %v95, 0.0
    %v121 = vadd.f32 %v119, %v120
    %v122 = vsel %vm39, %v99, 0.0
    %v123 = vadd.f32 %v121, %v122
    %v124 = vsel %vm39, %v103, 0.0
    %v125 = vadd.f32 %v123, %v124
    %v126 = vsel %vm39, %v92, 0.0
    %v127 = vsel %vm39, %v96, 0.0
    %v128 = vadd.f32 %v126, %v127
    %v129 = vsel %vm39, %v100, 0.0
    %v130 = vadd.f32 %v128, %v129
    %v131 = vsel %vm39, %v104, 0.0
    %v132 = vadd.f32 %v130, %v131
    %v133 = vmul.f32 %v111, %v68
    %v134 = vmul.f32 %v118, %v68
    %v135 = vmul.f32 %v125, %v68
    %v136 = vmul.f32 %v132, %v68
    %v137 = vadd.f32 %v133, 1e-08
    %v138 = vadd.f32 %v134, 1e-08
    %v139 = vadd.f32 %v135, 1e-08
    %v140 = vadd.f32 %v136, 1e-08
    %v141 = vrsqrt.pop %v137
    %v142 = vmul.f32 %v137, %v141
    %vm143 = vcmp.eq.f32.partialorder %v137, inf
    %v144 = vsel %vm143, %v137, %v142
    %vm145 = vcmp.eq.f32.partialorder %v137, 0.0
    %v146 = vand.u32 %v137, 2147483648
    %v147 = vsel %vm145, %v146, %v144
    %v148 = vrsqrt.pop %v138
    %v149 = vmul.f32 %v138, %v148
    %vm150 = vcmp.eq.f32.partialorder %v138, inf
    %v151 = vsel %vm150, %v138, %v149
    %vm152 = vcmp.eq.f32.partialorder %v138, 0.0
    %v153 = vand.u32 %v138, 2147483648
    %v154 = vsel %vm152, %v153, %v151
    %v155 = vrsqrt.pop %v139
    %v156 = vmul.f32 %v139, %v155
    %vm157 = vcmp.eq.f32.partialorder %v139, inf
    %v158 = vsel %vm157, %v139, %v156
    %vm159 = vcmp.eq.f32.partialorder %v139, 0.0
    %v160 = vand.u32 %v139, 2147483648
    %v161 = vsel %vm159, %v160, %v158
    %v162 = vrsqrt.pop %v140
    %v163 = vmul.f32 %v140, %v162
    %vm164 = vcmp.eq.f32.partialorder %v140, inf
    %v165 = vsel %vm164, %v140, %v163
    %vm166 = vcmp.eq.f32.partialorder %v140, 0.0
    %v167 = vand.u32 %v140, 2147483648
    %v168 = vsel %vm166, %v167, %v165
    %v169 = vsel %vm39, %v147, 0.0
    %v170 = vsel %vm39, %v154, 0.0
    %v171 = vadd.f32 %v169, %v170
    %v172 = vsel %vm39, %v161, 0.0
    %v173 = vadd.f32 %v171, %v172
    %v174 = vsel %vm39, %v168, 0.0
    %v175 = vadd.f32 %v173, %v174
    %176 = vadd.xlane.f32.xlu0 %v175
    %v177 = vpop.xlane.xlu0 %176
    %v178 = vrot.slane %v177, 4
    %v179 = vadd.f32 %v177, %v178
    %v180 = vrot.slane %v179, 2
    %v181 = vadd.f32 %v179, %v180
    %v182 = vrot.slane %v181, 1
    %v183 = vadd.f32 %v181, %v182
    %s184 = vtos %v183
    %v185 = vrcp.pop 128.0
    %s186 = vtos %v185
    %s187 = smul.f32 %s184, %s186
    %v188 = vstv %s187
    %vm189 = vcmask 0
    %190 = vst.msk [vmem:[#allocation5] sm:$0x1] %vm189, %v188
    // Predicated region
    $region10: #{tpu_custom_call.1} parent=1 // pred_check
      _
    $region11: #{tpu_custom_call.1} parent=1 // pred_check_branch
      %192 = sbr.rel (0) target = $region13
    $region12: #{tpu_custom_call.1} parent=1 // pred_region
      %s194 = ssub.s32 16, 16
      %195 = vsyncadd [#allocation4], %s194
      %s197 = sshll.u32 [#allocation5], 4
      %s198 = int_to_ptr.vmem [resolvable:$true] %s197
      %200 = dma.vmem_to_hbm [thread:$0]  %s198, 16, %s1, [#allocation4]
    $region13: #{tpu_custom_call.1} parent=1 // pred_fallthru
      _
    // Predicated region
    $region14: #{tpu_custom_call.1} parent=1 // pred_check
      _
    $region15: #{tpu_custom_call.1} parent=1 // pred_check_branch
      %202 = sbr.rel (0) target = $region17
    $region16: #{tpu_custom_call.1} parent=1 // pred_region
      %203 = dma.done [#allocation4], 16
    $region17: #{tpu_custom_call.1} parent=1 // pred_fallthru
      _
    %204 = vsyncpa [#allocation3], 1
    %205 = vsyncpa [#allocation4], 1

</llo_original>
